<compile_context>
chip_gen: v7x
topology: tpu7x:2x2x1
jax: 0.10.0
libtpu: 0.0.40
codegen_flags: <defaults>
</compile_context>

<pallas_src>
import jax
import jax.numpy as jnp
from jax.experimental import pallas as pl
from jax.experimental.pallas import tpu as pltpu

FEAT = 325        # fc1 in_features (kept unpadded end-to-end)
H1 = 256          # fc1 out / fc2 in
H2 = 64           # fc2 out / value_head in
H2_PAD = 128      # lane-aligned hidden2 (zero padding is exact math)


def _round_up(x, m):
    return (x + m - 1) // m * m


def mlp_value_kernel(x_ref, w1_ref, b1_ref, w2_ref, b2_ref, w3_ref, b3_ref,
                     out_ref):
    # fc1 + ReLU. x arrives f32 from HBM; cast in-register to the weight dtype
    # (bf16 on the fast path) so the MXU runs at native rate. Contraction width
    # is the true 325; Mosaic masks its internal lane padding.
    x = x_ref[...].astype(w1_ref.dtype)
    h1 = jnp.dot(x, w1_ref[...],
                 preferred_element_type=jnp.float32) + b1_ref[...]
    h1 = jnp.maximum(h1, 0.0)

    # fc2 + ReLU (padded output lanes 64..127 are exactly zero).
    h2 = jnp.dot(h1.astype(w2_ref.dtype), w2_ref[...],
                 preferred_element_type=jnp.float32) + b2_ref[...]
    h2 = jnp.maximum(h2, 0.0)

    # value head (width 1): VPU multiply + lane reduction; scalar bias in SMEM.
    # Epilogue stays f32 on every chip generation.
    v = jnp.sum(h2 * w3_ref[...], axis=-1, keepdims=True) + b3_ref[0]
    out_ref[...] = jnp.tanh(v)


def prepare_params(params, *, use_bf16=False):
    """One-time (per parameter set) padding / casting into kernel layout."""
    w1, b1, w2, b2, w3, b3 = params
    mxu_dtype = jnp.bfloat16 if use_bf16 else jnp.float32
    w1_k = w1.astype(mxu_dtype)                                      # [325, 256]
    b1_k = jnp.reshape(b1, (1, H1)).astype(jnp.float32)              # [1, 256]
    w2_k = jnp.pad(w2, ((0, 0), (0, H2_PAD - H2))).astype(mxu_dtype)  # [256, 128]
    b2_k = jnp.pad(jnp.reshape(b2, (1, H2)),
                   ((0, 0), (0, H2_PAD - H2))).astype(jnp.float32)   # [1, 128]
    w3_k = jnp.pad(jnp.reshape(w3, (1, H2)),
                   ((0, 0), (0, H2_PAD - H2))).astype(jnp.float32)   # [1, 128]
    b3_k = jnp.reshape(b3, (1,)).astype(jnp.float32)                 # SMEM scalar
    return (w1_k, b1_k, w2_k, b2_k, w3_k, b3_k)


def neural_network_forward(x, kernel_params, *, tile_b=1024):
    """x: [B, 325] float32. kernel_params: output of prepare_params().
    Returns [B, 1] float32 (tanh of the value logit)."""
    w1_k, b1_k, w2_k, b2_k, w3_k, b3_k = kernel_params
    B = x.shape[0]

    tb = min(_round_up(tile_b, 8), _round_up(max(B, 1), 8))
    num_tiles = pl.cdiv(B, tb)   # ceil-divided grid; ragged tail is masked

    const = lambda shape: pl.BlockSpec(shape, lambda i: (0, 0))

    out = pl.pallas_call(
        mlp_value_kernel,
        out_shape=jax.ShapeDtypeStruct((B, 1), jnp.float32),
        grid=(num_tiles,),
        in_specs=[
            pl.BlockSpec((tb, FEAT), lambda i: (i, 0)),           # x tile (pipelined)
            const((FEAT, H1)),                                    # W1 (VMEM-resident)
            const((1, H1)),                                       # b1
            const((H1, H2_PAD)),                                  # W2
            const((1, H2_PAD)),                                   # b2
            const((1, H2_PAD)),                                   # w3 row
            pl.BlockSpec(memory_space=pltpu.MemorySpace.SMEM),    # b3 scalar
        ],
        out_specs=pl.BlockSpec((tb, 1), lambda i: (i, 0)),
        compiler_params=pltpu.CompilerParams(
            dimension_semantics=("parallel",),
            vmem_limit_bytes=32 * 1024 * 1024,
        ),
    )(x, w1_k, b1_k, w2_k, b2_k, w3_k, b3_k)

    return out


def init_params(key):
    """Deterministic init mimicking nn.Linear: U(-1/sqrt(fan_in), 1/sqrt(fan_in))."""
    def linear(key, fan_in, fan_out):
        kw, kb = jax.random.split(key)
        bound = 1.0 / jnp.sqrt(float(fan_in))
        w = jax.random.uniform(kw, (fan_in, fan_out), jnp.float32,
                               minval=-bound, maxval=bound)
        b = jax.random.uniform(kb, (1, fan_out), jnp.float32,
                               minval=-bound, maxval=bound)
        return w, b

    k1, k2, k3 = jax.random.split(key, 3)
    w1, b1 = linear(k1, FEAT, H1)
    w2, b2 = linear(k2, H1, H2)
    w3, b3 = linear(k3, H2, 1)
    return (w1, b1, w2, b2, w3, b3)


def reference_forward(x, params):
    w1, b1, w2, b2, w3, b3 = params
    h1 = jnp.maximum(x @ w1 + b1, 0.0)
    h2 = jnp.maximum(h1 @ w2 + b2, 0.0)
    return jnp.tanh(h2 @ w3 + b3)


if __name__ == "__main__":
    key = jax.random.PRNGKey(0)
    kx, kp = jax.random.split(key)
    params = init_params(kp)

    # Kernel-layout params, prepared once (not per call).
    kparams_f32 = jax.tree_util.tree_map(
        jax.block_until_ready, prepare_params(params, use_bf16=False))
    kparams_bf16 = jax.tree_util.tree_map(
        jax.block_until_ready, prepare_params(params, use_bf16=True))

    # Small batch (typical MCTS leaf-eval usage): single grid step, f32 path.
    B = 8
    x = jax.random.normal(kx, (B, FEAT), dtype=jnp.float32)
    out = jax.block_until_ready(neural_network_forward(x, kparams_f32))
    ref = reference_forward(x, params)
    assert out.shape == (B, 1)
    assert jnp.allclose(out, ref, atol=2e-5, rtol=1e-5), "mismatch vs reference (B=8)"

    # predict()-style single state.
    x1 = jax.random.normal(jax.random.fold_in(kx, 2), (1, FEAT), dtype=jnp.float32)
    out1 = jax.block_until_ready(neural_network_forward(x1, kparams_f32))
    ref1 = reference_forward(x1, params)
    assert out1.shape == (1, 1)
    assert jnp.allclose(out1, ref1, atol=2e-5, rtol=1e-5), "mismatch vs reference (B=1)"

    # Multi-tile path with a ragged (masked, unpadded) tail: grid = cdiv(300,128)=3.
    B2 = 300
    x2 = jax.random.normal(jax.random.fold_in(kx, 1), (B2, FEAT), dtype=jnp.float32)
    out2 = jax.block_until_ready(
        neural_network_forward(x2, kparams_f32, tile_b=128))
    ref2 = reference_forward(x2, params)
    assert out2.shape == (B2, 1)
    assert jnp.allclose(out2, ref2, atol=2e-5, rtol=1e-5), "mismatch vs reference (B=300)"

    # bf16 fast path (MXU-native weights, f32 accumulation + f32 epilogue).
    B3 = 64
    x3 = jax.random.normal(jax.random.fold_in(kx, 3), (B3, FEAT), dtype=jnp.float32)
    out3 = jax.block_until_ready(neural_network_forward(x3, kparams_bf16))
    ref3 = reference_forward(x3, params)
    assert out3.shape == (B3, 1)
    assert jnp.allclose(out3, ref3, atol=3e-2, rtol=0.0), "mismatch vs reference (bf16)"

    print("KERNEL_OK")
</pallas_src>

<mosaic_0001>
module attributes {stable_mosaic.version = 11 : i64} {
  func.func @mlp_value_kernel(%arg0: i32, %arg1: memref<8x325xf32, #tpu.memory_space<vmem>>, %arg2: memref<325x256xf32, #tpu.memory_space<vmem>>, %arg3: memref<1x256xf32, #tpu.memory_space<vmem>>, %arg4: memref<256x128xf32, #tpu.memory_space<vmem>>, %arg5: memref<1x128xf32, #tpu.memory_space<vmem>>, %arg6: memref<1x128xf32, #tpu.memory_space<vmem>>, %arg7: memref<1xf32, #tpu.memory_space<smem>>, %arg8: memref<8x1xf32, #tpu.memory_space<vmem>>) attributes {dimension_semantics = [#tpu.dimension_semantics<parallel>], iteration_bounds = array<i64: 1>, scalar_prefetch = 0 : i64, scratch_operands = 0 : i64, tpu.core_type = #tpu.core_type<tc>, window_params = [{transform_indices = @transform_0, window_bounds = array<i64: 8, 325>}, {pipeline_mode = #tpu.pipeline_mode<synchronous>, transform_indices = @transform_1, window_bounds = array<i64: 325, 256>}, {pipeline_mode = #tpu.pipeline_mode<synchronous>, transform_indices = @transform_2, window_bounds = array<i64: 1, 256>}, {pipeline_mode = #tpu.pipeline_mode<synchronous>, transform_indices = @transform_3, window_bounds = array<i64: 256, 128>}, {pipeline_mode = #tpu.pipeline_mode<synchronous>, transform_indices = @transform_4, window_bounds = array<i64: 1, 128>}, {pipeline_mode = #tpu.pipeline_mode<synchronous>, transform_indices = @transform_5, window_bounds = array<i64: 1, 128>}, {transform_indices = @transform_6, window_bounds = array<i64: 1>}, {transform_indices = @transform_7, window_bounds = array<i64: 8, 1>}]} {
    %c0 = arith.constant 0 : index
    %c0_0 = arith.constant 0 : index
    %0 = vector.load %arg1[%c0, %c0_0] : memref<8x325xf32, #tpu.memory_space<vmem>>, vector<8x325xf32>
    %c0_1 = arith.constant 0 : index
    %c0_2 = arith.constant 0 : index
    %1 = vector.load %arg2[%c0_1, %c0_2] : memref<325x256xf32, #tpu.memory_space<vmem>>, vector<325x256xf32>
    %cst = arith.constant dense<0.000000e+00> : vector<8x256xf32>
    %2 = tpu.matmul %0, %1, %cst {dimension_numbers = #tpu.dot_dimension_numbers<[1], [0], [0], [1], [0, 0, 1, 1], [], []>} : vector<8x325xf32>, vector<325x256xf32>, vector<8x256xf32> -> vector<8x256xf32>
    %c0_3 = arith.constant 0 : index
    %c0_4 = arith.constant 0 : index
    %3 = vector.load %arg3[%c0_3, %c0_4] : memref<1x256xf32, #tpu.memory_space<vmem>>, vector<1x256xf32>
    %4 = vector.broadcast %3 : vector<1x256xf32> to vector<8x256xf32>
    %5 = arith.addf %2, %4 : vector<8x256xf32>
    %cst_5 = arith.constant 0.000000e+00 : f32
    %6 = vector.broadcast %cst_5 : f32 to vector<8x256xf32>
    %7 = arith.maximumf %5, %6 : vector<8x256xf32>
    %c0_6 = arith.constant 0 : index
    %c0_7 = arith.constant 0 : index
    %8 = vector.load %arg4[%c0_6, %c0_7] : memref<256x128xf32, #tpu.memory_space<vmem>>, vector<256x128xf32>
    %cst_8 = arith.constant dense<0.000000e+00> : vector<8x128xf32>
    %9 = tpu.matmul %7, %8, %cst_8 {dimension_numbers = #tpu.dot_dimension_numbers<[1], [0], [0], [1], [0, 0, 1, 1], [], []>} : vector<8x256xf32>, vector<256x128xf32>, vector<8x128xf32> -> vector<8x128xf32>
    %c0_9 = arith.constant 0 : index
    %c0_10 = arith.constant 0 : index
    %10 = vector.load %arg5[%c0_9, %c0_10] : memref<1x128xf32, #tpu.memory_space<vmem>>, vector<1x128xf32>
    %11 = vector.broadcast %10 : vector<1x128xf32> to vector<8x128xf32>
    %12 = arith.addf %9, %11 : vector<8x128xf32>
    %cst_11 = arith.constant 0.000000e+00 : f32
    %13 = vector.broadcast %cst_11 : f32 to vector<8x128xf32>
    %14 = arith.maximumf %12, %13 : vector<8x128xf32>
    %c0_12 = arith.constant 0 : index
    %c0_13 = arith.constant 0 : index
    %15 = vector.load %arg6[%c0_12, %c0_13] : memref<1x128xf32, #tpu.memory_space<vmem>>, vector<1x128xf32>
    %16 = vector.broadcast %15 : vector<1x128xf32> to vector<8x128xf32>
    %17 = arith.mulf %14, %16 : vector<8x128xf32>
    %cst_14 = arith.constant dense<0.000000e+00> : vector<8xf32>
    %18 = vector.multi_reduction <add>, %17, %cst_14 [1] : vector<8x128xf32> to vector<8xf32>
    %19 = vector.shape_cast %18 : vector<8xf32> to vector<8x1xf32>
    %c0_15 = arith.constant 0 : index
    %20 = memref.load %arg7[%c0_15] : memref<1xf32, #tpu.memory_space<smem>>
    %21 = vector.broadcast %20 : f32 to vector<8x1xf32>
    %22 = arith.addf %19, %21 : vector<8x1xf32>
    %23 = math.tanh %22 : vector<8x1xf32>
    %c0_16 = arith.constant 0 : index
    %c0_17 = arith.constant 0 : index
    %24 = vector.load %arg8[%c0_16, %c0_17] : memref<8x1xf32, #tpu.memory_space<vmem>>, vector<8x1xf32>
    tpu.vector_store %arg8[%c0_16, %c0_17], %23 {strides = array<i32>} : memref<8x1xf32, #tpu.memory_space<vmem>>, vector<8x1xf32>,
    return
  }
  func.func @transform_0(%arg0: i32) -> (i32, i32) {
    %c0_i32 = arith.constant 0 : i32
    %c0_i32_0 = arith.constant 0 : i32
    return %arg0, %c0_i32 : i32, i32
  }
  func.func @transform_1(%arg0: i32) -> (i32, i32) {
    %c0_i32 = arith.constant 0 : i32
    %c0_i32_0 = arith.constant 0 : i32
    %c0_i32_1 = arith.constant 0 : i32
    return %c0_i32, %c0_i32_0 : i32, i32
  }
  func.func @transform_2(%arg0: i32) -> (i32, i32) {
    %c0_i32 = arith.constant 0 : i32
    %c0_i32_0 = arith.constant 0 : i32
    %c0_i32_1 = arith.constant 0 : i32
    return %c0_i32, %c0_i32_0 : i32, i32
  }
  func.func @transform_3(%arg0: i32) -> (i32, i32) {
    %c0_i32 = arith.constant 0 : i32
    %c0_i32_0 = arith.constant 0 : i32
    %c0_i32_1 = arith.constant 0 : i32
    return %c0_i32, %c0_i32_0 : i32, i32
  }
  func.func @transform_4(%arg0: i32) -> (i32, i32) {
    %c0_i32 = arith.constant 0 : i32
    %c0_i32_0 = arith.constant 0 : i32
    %c0_i32_1 = arith.constant 0 : i32
    return %c0_i32, %c0_i32_0 : i32, i32
  }
  func.func @transform_5(%arg0: i32) -> (i32, i32) {
    %c0_i32 = arith.constant 0 : i32
    %c0_i32_0 = arith.constant 0 : i32
    %c0_i32_1 = arith.constant 0 : i32
    return %c0_i32, %c0_i32_0 : i32, i32
  }
  func.func @transform_6(%arg0: i32) -> i32 {
    %c0_i32 = arith.constant 0 : i32
    %c0_i32_0 = arith.constant 0 : i32
    return %c0_i32 : i32
  }
  func.func @transform_7(%arg0: i32) -> (i32, i32) {
    %c0_i32 = arith.constant 0 : i32
    %c0_i32_0 = arith.constant 0 : i32
    return %arg0, %c0_i32 : i32, i32
  }
}

</mosaic_0001>

<llo_original>
// kernel: tpu_custom_call.1
$region0: #{tpu_custom_call.1}
  #allocation0 [shape = 'u32[]', space=smem, size = 0x4, offset = 0x4, fixed_abs, tag = 'smem constant byte address 0x4 - core index']
  #allocation1 [shape = 'u32[144,128]{1,0:T(1,128)}', space=vmem, size = 0x12000, scoped, tag = 'internal scratch']
  #allocation2 [shape = 'f32[1]{0:T(128)S(6)}', space=smem, size = 0x200, scoped, tag = 'scoped memory for tpu_custom_call.1']
  %s0 = inlined_call_operand.hbm [shape: f32[8,325], index: 0, kind: input, shape index: {}]
  %s1 = inlined_call_operand.hbm [shape: f32[325,256], index: 1, kind: input, shape index: {}]
  %s2 = inlined_call_operand.vmem [shape: f32[1,256], index: 2, kind: input, shape index: {}]
  %s3 = inlined_call_operand.hbm [shape: f32[256,128], index: 3, kind: input, shape index: {}]
  %s4 = inlined_call_operand.vmem [shape: f32[1,128], index: 4, kind: input, shape index: {}]
  %s5 = inlined_call_operand.vmem [shape: f32[1,128], index: 5, kind: input, shape index: {}]
  %s6 = inlined_call_operand.<no memory space> [shape: f32[1], index: 6, kind: input, shape index: {}]
  %s7 = inlined_call_operand.vmem [shape: f32[8,1], index: 7, kind: output, shape index: {}]
  %s8 = sld [smem:[#allocation0]]
  $region50: #{tpu_custom_call.1} parent=0
    _
  %s10 = ssub.s32 1, %s8
  %s11 = scalar_select 0, %s10, %s8
  %12 = sst [smem:[#allocation2]] %s6
  $region1: #{tpu_custom_call.1} parent=0
    #allocation3 [shape = 'u8[12288]{0}', space=vmem, size = 0x3000, scoped, tag = 'input window, operand 0, single buffered']
    #allocation4 [shape = 's32[1]{0}', space=sflag, size = 0x4, scoped, tag = 'scoped memory for tpu_custom_call.1']
    #allocation5 [shape = 'u8[335872]{0}', space=vmem, size = 0x52000, scoped, tag = 'input window, operand 1, single buffered']
    #allocation6 [shape = 's32[1]{0}', space=sflag, size = 0x4, scoped, tag = 'scoped memory for tpu_custom_call.1']
    #allocation7 [shape = 'u8[131072]{0}', space=vmem, size = 0x20000, scoped, tag = 'input window, operand 3, single buffered']
    %13 = vsyncpa [#allocation4], 0
    %14 = vsyncpa [#allocation6], 0
    // Predicated region
    $region2: #{tpu_custom_call.1} parent=1 // pred_check
      _
    $region3: #{tpu_custom_call.1} parent=1 // pred_check_branch
      %16 = sbr.rel (0) target = $region5
    $region4: #{tpu_custom_call.1} parent=1 // pred_region
      %s18 = ssub.s32 384, 384
      %19 = vsyncadd [#allocation4], %s18
      %s21 = sshll.u32 [#allocation3], 4
      %s22 = int_to_ptr.vmem [resolvable:$true] %s21
      %24 = dma.hbm_to_vmem [thread:$0]  %s0, 384, %s22, [#allocation4]
    $region5: #{tpu_custom_call.1} parent=1 // pred_fallthru
      _
    // Predicated region
    $region6: #{tpu_custom_call.1} parent=1 // pred_check
      _
    $region7: #{tpu_custom_call.1} parent=1 // pred_check_branch
      %26 = sbr.rel (0) target = $region9
    $region8: #{tpu_custom_call.1} parent=1 // pred_region
      %s28 = ssub.s32 10496, 10496
      %29 = vsyncadd [#allocation6], %s28
      %s30 = sshll.u32 [#allocation5], 4
      %s31 = int_to_ptr.vmem [resolvable:$true] %s30
      %36 = dma.hbm_to_vmem [thread:$0]  %s1, 10496, %s31, [#allocation6], 256, 256, 16
    $region9: #{tpu_custom_call.1} parent=1 // pred_fallthru
      _
    // Predicated region
    $region10: #{tpu_custom_call.1} parent=1 // pred_check
      _
    $region11: #{tpu_custom_call.1} parent=1 // pred_check_branch
      %38 = sbr.rel (0) target = $region13
    $region12: #{tpu_custom_call.1} parent=1 // pred_region
      _
    $region13: #{tpu_custom_call.1} parent=1 // pred_fallthru
      _
    // Predicated region
    $region14: #{tpu_custom_call.1} parent=1 // pred_check
      _
    $region15: #{tpu_custom_call.1} parent=1 // pred_check_branch
      %40 = sbr.rel (0) target = $region17
    $region16: #{tpu_custom_call.1} parent=1 // pred_region
      %s42 = ssub.s32 4096, 4096
      %43 = vsyncadd [#allocation6], %s42
      %s44 = sshll.u32 [#allocation7], 4
      %s45 = int_to_ptr.vmem [resolvable:$true] %s44
      %50 = dma.hbm_to_vmem [thread:$0]  %s3, 4096, %s45, [#allocation6], 128, 128, 8
    $region17: #{tpu_custom_call.1} parent=1 // pred_fallthru
      _
    // Predicated region
    $region18: #{tpu_custom_call.1} parent=1 // pred_check
      _
    $region19: #{tpu_custom_call.1} parent=1 // pred_check_branch
      %52 = sbr.rel (0) target = $region21
    $region20: #{tpu_custom_call.1} parent=1 // pred_region
      _
    $region21: #{tpu_custom_call.1} parent=1 // pred_fallthru
      _
    // Predicated region
    $region22: #{tpu_custom_call.1} parent=1 // pred_check
      _
    $region23: #{tpu_custom_call.1} parent=1 // pred_check_branch
      %54 = sbr.rel (0) target = $region25
    $region24: #{tpu_custom_call.1} parent=1 // pred_region
      _
    $region25: #{tpu_custom_call.1} parent=1 // pred_fallthru
      _
    // Predicated region
    $region26: #{tpu_custom_call.1} parent=1 // pred_check
      _
    $region27: #{tpu_custom_call.1} parent=1 // pred_check_branch
      %56 = sbr.rel (0) target = $region29
    $region28: #{tpu_custom_call.1} parent=1 // pred_region
      _
    $region29: #{tpu_custom_call.1} parent=1 // pred_fallthru
      _
    // Predicated region
    $region30: #{tpu_custom_call.1} parent=1 // pred_check
      _
    $region31: #{tpu_custom_call.1} parent=1 // pred_check_branch
      %58 = sbr.rel (0) target = $region33
    $region32: #{tpu_custom_call.1} parent=1 // pred_region
      %59 = dma.done [#allocation4], 384
    $region33: #{tpu_custom_call.1} parent=1 // pred_fallthru
      _
    // Predicated region
    $region34: #{tpu_custom_call.1} parent=1 // pred_check
      _
    $region35: #{tpu_custom_call.1} parent=1 // pred_check_branch
      %61 = sbr.rel (0) target = $region37
    $region36: #{tpu_custom_call.1} parent=1 // pred_region
      %62 = dma.done [#allocation6], 10496
    $region37: #{tpu_custom_call.1} parent=1 // pred_fallthru
      _
    // Predicated region
    $region38: #{tpu_custom_call.1} parent=1 // pred_check
      _
    $region39: #{tpu_custom_call.1} parent=1 // pred_check_branch
      %64 = sbr.rel (0) target = $region41
    $region40: #{tpu_custom_call.1} parent=1 // pred_region
      %65 = dma.done [#allocation6], 4096
    $region41: #{tpu_custom_call.1} parent=1 // pred_fallthru
      _
    %v66 = vld [vmem:[#allocation3] sm:$0xff]
    %v67 = vld [vmem:[#allocation3 + $0x8] sm:$0xff]
    %v68 = vld [vmem:[#allocation3 + $0x10] sm:$0xff]
    %v69 = vld [vmem:[#allocation5] sm:$0xff]
    %v70 = vld [vmem:[#allocation5 + $0x8] sm:$0xff]
    %v71 = vld [vmem:[#allocation5 + $0x10] sm:$0xff]
    %v72 = vld [vmem:[#allocation5 + $0x18] sm:$0xff]
    %v73 = vld [vmem:[#allocation5 + $0x20] sm:$0xff]
    %v74 = vld [vmem:[#allocation5 + $0x28] sm:$0xff]
    %v75 = vld [vmem:[#allocation5 + $0x30] sm:$0xff]
    %v76 = vld [vmem:[#allocation5 + $0x38] sm:$0xff]
    %v77 = vld [vmem:[#allocation5 + $0x40] sm:$0xff]
    %v78 = vld [vmem:[#allocation5 + $0x48] sm:$0xff]
    %v79 = vld [vmem:[#allocation5 + $0x50] sm:$0xff]
    %v80 = vld [vmem:[#allocation5 + $0x58] sm:$0xff]
    %v81 = vld [vmem:[#allocation5 + $0x60] sm:$0xff]
    %v82 = vld [vmem:[#allocation5 + $0x68] sm:$0xff]
    %v83 = vld [vmem:[#allocation5 + $0x70] sm:$0xff]
    %v84 = vld [vmem:[#allocation5 + $0x78] sm:$0xff]
    %v85 = vld [vmem:[#allocation5 + $0x80] sm:$0xff]
    %v86 = vld [vmem:[#allocation5 + $0x88] sm:$0xff]
    %v87 = vld [vmem:[#allocation5 + $0x90] sm:$0xff]
    %v88 = vld [vmem:[#allocation5 + $0x98] sm:$0xff]
    %v89 = vld [vmem:[#allocation5 + $0xa0] sm:$0xff]
    %v90 = vld [vmem:[#allocation5 + $0xa8] sm:$0xff]
    %v91 = vld [vmem:[#allocation5 + $0xb0] sm:$0xff]
    %v92 = vld [vmem:[#allocation5 + $0xb8] sm:$0xff]
    %v93 = vld [vmem:[#allocation5 + $0xc0] sm:$0xff]
    %v94 = vld [vmem:[#allocation5 + $0xc8] sm:$0xff]
    %v95 = vld [vmem:[#allocation5 + $0xd0] sm:$0xff]
    %v96 = vld [vmem:[#allocation5 + $0xd8] sm:$0xff]
    %v97 = vld [vmem:[#allocation5 + $0xe0] sm:$0xff]
    %v98 = vld [vmem:[#allocation5 + $0xe8] sm:$0xff]
    %v99 = vld [vmem:[#allocation5 + $0xf0] sm:$0xff]
    %v100 = vld [vmem:[#allocation5 + $0xf8] sm:$0xff]
    %v101 = vld [vmem:[#allocation5 + $0x100] sm:$0xff]
    %v102 = vld [vmem:[#allocation5 + $0x108] sm:$0xff]
    %v103 = vld [vmem:[#allocation5 + $0x110] sm:$0xff]
    %v104 = vld [vmem:[#allocation5 + $0x118] sm:$0xff]
    %v105 = vld [vmem:[#allocation5 + $0x120] sm:$0xff]
    %v106 = vld [vmem:[#allocation5 + $0x128] sm:$0xff]
    %v107 = vld [vmem:[#allocation5 + $0x130] sm:$0xff]
    %v108 = vld [vmem:[#allocation5 + $0x138] sm:$0xff]
    %v109 = vld [vmem:[#allocation5 + $0x140] sm:$0xff]
    %v110 = vld [vmem:[#allocation5 + $0x148] sm:$0xff]
    %v111 = vld [vmem:[#allocation5 + $0x150] sm:$0xff]
    %v112 = vld [vmem:[#allocation5 + $0x158] sm:$0xff]
    %v113 = vld [vmem:[#allocation5 + $0x160] sm:$0xff]
    %v114 = vld [vmem:[#allocation5 + $0x168] sm:$0xff]
    %v115 = vld [vmem:[#allocation5 + $0x170] sm:$0xff]
    %v116 = vld [vmem:[#allocation5 + $0x178] sm:$0xff]
    %v117 = vld [vmem:[#allocation5 + $0x180] sm:$0xff]
    %v118 = vld [vmem:[#allocation5 + $0x188] sm:$0xff]
    %v119 = vld [vmem:[#allocation5 + $0x190] sm:$0xff]
    %v120 = vld [vmem:[#allocation5 + $0x198] sm:$0xff]
    %v121 = vld [vmem:[#allocation5 + $0x1a0] sm:$0xff]
    %v122 = vld [vmem:[#allocation5 + $0x1a8] sm:$0xff]
    %v123 = vld [vmem:[#allocation5 + $0x1b0] sm:$0xff]
    %v124 = vld [vmem:[#allocation5 + $0x1b8] sm:$0xff]
    %v125 = vld [vmem:[#allocation5 + $0x1c0] sm:$0xff]
    %v126 = vld [vmem:[#allocation5 + $0x1c8] sm:$0xff]
    %v127 = vld [vmem:[#allocation5 + $0x1d0] sm:$0xff]
    %v128 = vld [vmem:[#allocation5 + $0x1d8] sm:$0xff]
    %v129 = vld [vmem:[#allocation5 + $0x1e0] sm:$0xff]
    %v130 = vld [vmem:[#allocation5 + $0x1e8] sm:$0xff]
    %v131 = vld [vmem:[#allocation5 + $0x1f0] sm:$0xff]
    %v132 = vld [vmem:[#allocation5 + $0x1f8] sm:$0xff]
    %v133 = vld [vmem:[#allocation5 + $0x200] sm:$0xff]
    %v134 = vld [vmem:[#allocation5 + $0x208] sm:$0xff]
    %v135 = vld [vmem:[#allocation5 + $0x210] sm:$0xff]
    %v136 = vld [vmem:[#allocation5 + $0x218] sm:$0xff]
    %v137 = vld [vmem:[#allocation5 + $0x220] sm:$0xff]
    %v138 = vld [vmem:[#allocation5 + $0x228] sm:$0xff]
    %v139 = vld [vmem:[#allocation5 + $0x230] sm:$0xff]
    %v140 = vld [vmem:[#allocation5 + $0x238] sm:$0xff]
    %v141 = vld [vmem:[#allocation5 + $0x240] sm:$0xff]
    %v142 = vld [vmem:[#allocation5 + $0x248] sm:$0xff]
    %v143 = vld [vmem:[#allocation5 + $0x250] sm:$0xff]
    %v144 = vld [vmem:[#allocation5 + $0x258] sm:$0xff]
    %v145 = vld [vmem:[#allocation5 + $0x260] sm:$0xff]
    %v146 = vld [vmem:[#allocation5 + $0x268] sm:$0xff]
    %v147 = vld [vmem:[#allocation5 + $0x270] sm:$0xff]
    %v148 = vld [vmem:[#allocation5 + $0x278] sm:$0xff]
    %v149 = vld [vmem:[#allocation5 + $0x280] sm:$0x1f]
    %v150 = vld [vmem:[#allocation5 + $0x288] sm:$0x1f]
    %v151 = vld [vmem:[%s2] sm:$0x3]
    %v153 = vlaneseq
    %v154 = vshrl.u32 %v153, 7
    %v155 = vsub.s32 0, %v154
    %v156 = vrot.slane %v151, %v155
    %v157 = vlaneseq
    %v158 = vshrl.u32 %v157, 7
    %v159 = vsub.s32 1, %v158
    %v160 = vrot.slane %v151, %v159
    %vm163 = vcmask 564224
    %v165 = vsel %vm163, %v68, 0
    %vm167 = vcmask 1044480
    %v169 = vsel %vm167, %v149, 0
    %v172 = vsel %vm167, %v150, 0
    %174 = vmatprep.subr.mxu0 %v70
    %175 = vmatpush1.msra.mxu0 %v69
    %176 = vmatprep.subr.mxu0 %v72
    %177 = vmatpush1.msra.mxu0 %v71
    %178 = vmatprep.subr.mxu0 %v74
    %179 = vmatpush1.msra.mxu0 %v73
    %180 = vmatprep.subr.mxu0 %v76
    %181 = vmatpush1.msra.mxu0 %v75
    %182 = vmatprep.subr.mxu0 %v78
    %183 = vmatpush1.msra.mxu0 %v77
    %184 = vmatprep.subr.mxu0 %v80
    %185 = vmatpush1.msra.mxu0 %v79
    %186 = vmatprep.subr.mxu0 %v82
    %187 = vmatpush1.msra.mxu0 %v81
    %188 = vmatprep.subr.mxu0 %v84
    %189 = vmatpush1.msra.mxu0 %v83
    %190 = vmatprep.subr.mxu0 %v86
    %191 = vmatpush1.msra.mxu0 %v85
    %192 = vmatprep.subr.mxu0 %v88
    %193 = vmatpush1.msra.mxu0 %v87
    %194 = vmatprep.subr.mxu0 %v90
    %195 = vmatpush1.msra.mxu0 %v89
    %196 = vmatprep.subr.mxu0 %v92
    %197 = vmatpush1.msra.mxu0 %v91
    %198 = vmatprep.subr.mxu0 %v94
    %199 = vmatpush1.msra.mxu0 %v93
    %200 = vmatprep.subr.mxu0 %v96
    %201 = vmatpush1.msra.mxu0 %v95
    %202 = vmatprep.subr.mxu0 %v98
    %203 = vmatpush1.msra.mxu0 %v97
    %204 = vmatprep.subr.mxu0 %v100
    %205 = vmatpush1.msra.mxu0 %v99
    %206 = vmatprep.subr.mxu0 %v102
    %207 = vmatpush1.msra.mxu0 %v101
    %208 = vmatprep.subr.mxu0 %v104
    %209 = vmatpush1.msra.mxu0 %v103
    %210 = vmatprep.subr.mxu0 %v106
    %211 = vmatpush1.msra.mxu0 %v105
    %212 = vmatprep.subr.mxu0 %v108
    %213 = vmatpush1.msra.mxu0 %v107
    %214 = vmatprep.subr.mxu0 %v110
    %215 = vmatpush1.msra.mxu0 %v109
    %216 = vmatprep.subr.mxu0 %v112
    %217 = vmatpush1.msra.mxu0 %v111
    %218 = vmatprep.subr.mxu0 %v114
    %219 = vmatpush1.msra.mxu0 %v113
    %220 = vmatprep.subr.mxu0 %v116
    %221 = vmatpush1.msra.mxu0 %v115
    %222 = vmatprep.subr.mxu0 %v118
    %223 = vmatpush1.msra.mxu0 %v117
    %224 = vmatprep.subr.mxu0 %v120
    %225 = vmatpush1.msra.mxu0 %v119
    %226 = vmatprep.subr.mxu0 %v122
    %227 = vmatpush1.msra.mxu0 %v121
    %228 = vmatprep.subr.mxu0 %v124
    %229 = vmatpush1.msra.mxu0 %v123
    %230 = vmatprep.subr.mxu0 %v126
    %231 = vmatpush1.msra.mxu0 %v125
    %232 = vmatprep.subr.mxu0 %v128
    %233 = vmatpush1.msra.mxu0 %v127
    %234 = vmatprep.subr.mxu0 %v130
    %235 = vmatpush1.msra.mxu0 %v129
    %236 = vmatprep.subr.mxu0 %v132
    %237 = vmatpush1.msra.mxu0 %v131
    %238 = vmatprep.mubr.f32.mxu0 %v67
    %239 = vmatmul.mubr.f32.gmra.mrb[0].mxu0 %v66
    %v240 = vpop.f32.mrb[0].mxu0
    %v241 = vadd.f32 %v156, %v240
    %v242 = vpop.f32.mrb[0].mxu0
    %v243 = vadd.f32 %v160, %v242
    %244 = vdwg.mxu0
    %245 = vmatprep.subr.mxu0 %v134
    %246 = vmatpush1.msra.mxu0 %v133
    %247 = vmatprep.subr.mxu0 %v136
    %248 = vmatpush1.msra.mxu0 %v135
    %249 = vmatprep.subr.mxu0 %v138
    %250 = vmatpush1.msra.mxu0 %v137
    %251 = vmatprep.subr.mxu0 %v140
    %252 = vmatpush1.msra.mxu0 %v139
    %253 = vmatprep.subr.mxu0 %v142
    %254 = vmatpush1.msra.mxu0 %v141
    %255 = vmatprep.subr.mxu0 %v144
    %256 = vmatpush1.msra.mxu0 %v143
    %257 = vmatprep.subr.mxu0 %v146
    %258 = vmatpush1.msra.mxu0 %v145
    %259 = vmatprep.subr.mxu0 %v148
    %260 = vmatpush1.msra.mxu0 %v147
    %261 = vmatprep.subr.mxu0 %v172
    %262 = vmatpush1.msra.mxu0 %v169
    %263 = vmatprep.subr.mxu0 0.0
    %264 = vmatpush1.msra.mxu0 0.0
    %265 = vmatprep.subr.mxu0 0.0
    %266 = vmatpush1.msra.mxu0 0.0
    %267 = vmatprep.subr.mxu0 0.0
    %268 = vmatpush1.msra.mxu0 0.0
    %269 = vmatprep.subr.mxu0 0.0
    %270 = vmatpush1.msra.mxu0 0.0
    %271 = vmatprep.subr.mxu0 0.0
    %272 = vmatpush1.msra.mxu0 0.0
    %273 = vmatprep.subr.mxu0 0.0
    %274 = vmatpush1.msra.mxu0 0.0
    %275 = vmatprep.subr.mxu0 0.0
    %276 = vmatpush1.msra.mxu0 0.0
    %277 = vmatprep.subr.mxu0 0.0
    %278 = vmatpush1.msra.mxu0 0.0
    %279 = vmatprep.subr.mxu0 0.0
    %280 = vmatpush1.msra.mxu0 0.0
    %281 = vmatprep.subr.mxu0 0.0
    %282 = vmatpush1.msra.mxu0 0.0
    %283 = vmatprep.subr.mxu0 0.0
    %284 = vmatpush1.msra.mxu0 0.0
    %285 = vmatprep.subr.mxu0 0.0
    %286 = vmatpush1.msra.mxu0 0.0
    %287 = vmatprep.subr.mxu0 0.0
    %288 = vmatpush1.msra.mxu0 0.0
    %289 = vmatprep.subr.mxu0 0.0
    %290 = vmatpush1.msra.mxu0 0.0
    %291 = vmatprep.subr.mxu0 0.0
    %292 = vmatpush1.msra.mxu0 0.0
    %293 = vmatprep.subr.mxu0 0.0
    %294 = vmatpush1.msra.mxu0 0.0
    %295 = vmatprep.subr.mxu0 0.0
    %296 = vmatpush1.msra.mxu0 0.0
    %297 = vmatprep.subr.mxu0 0.0
    %298 = vmatpush1.msra.mxu0 0.0
    %299 = vmatprep.subr.mxu0 0.0
    %300 = vmatpush1.msra.mxu0 0.0
    %301 = vmatprep.subr.mxu0 0.0
    %302 = vmatpush1.msra.mxu0 0.0
    %303 = vmatprep.subr.mxu0 0.0
    %304 = vmatpush1.msra.mxu0 0.0
    %305 = vmatprep.subr.mxu0 0.0
    %306 = vmatpush1.msra.mxu0 0.0
    %307 = vmatprep.subr.mxu0 0.0
    %308 = vmatpush1.msra.mxu0 0.0
    %309 = vmatprep.mubr.f32.mxu0 0.0
    %310 = vmatmul.mubr.f32.gmra.mrb[0].mxu0 %v165
    %v311 = vpop.f32.mrb[0].mxu0
    %v312 = vadd.f32 %v241, %v311
    %v313 = vpop.f32.mrb[0].mxu0
    %v314 = vadd.f32 %v243, %v313
    %315 = vdwg.mxu0
    %v316 = vmax.f32 %v312, 0.0
    %v317 = vmax.f32 %v314, 0.0
    %v318 = vld [vmem:[#allocation7] sm:$0xff]
    %v319 = vld [vmem:[#allocation7 + $0x8] sm:$0xff]
    %v320 = vld [vmem:[#allocation7 + $0x10] sm:$0xff]
    %v321 = vld [vmem:[#allocation7 + $0x18] sm:$0xff]
    %v322 = vld [vmem:[#allocation7 + $0x20] sm:$0xff]
    %v323 = vld [vmem:[#allocation7 + $0x28] sm:$0xff]
    %v324 = vld [vmem:[#allocation7 + $0x30] sm:$0xff]
    %v325 = vld [vmem:[#allocation7 + $0x38] sm:$0xff]
    %v326 = vld [vmem:[#allocation7 + $0x40] sm:$0xff]
    %v327 = vld [vmem:[#allocation7 + $0x48] sm:$0xff]
    %v328 = vld [vmem:[#allocation7 + $0x50] sm:$0xff]
    %v329 = vld [vmem:[#allocation7 + $0x58] sm:$0xff]
    %v330 = vld [vmem:[#allocation7 + $0x60] sm:$0xff]
    %v331 = vld [vmem:[#allocation7 + $0x68] sm:$0xff]
    %v332 = vld [vmem:[#allocation7 + $0x70] sm:$0xff]
    %v333 = vld [vmem:[#allocation7 + $0x78] sm:$0xff]
    %v334 = vld [vmem:[#allocation7 + $0x80] sm:$0xff]
    %v335 = vld [vmem:[#allocation7 + $0x88] sm:$0xff]
    %v336 = vld [vmem:[#allocation7 + $0x90] sm:$0xff]
    %v337 = vld [vmem:[#allocation7 + $0x98] sm:$0xff]
    %v338 = vld [vmem:[#allocation7 + $0xa0] sm:$0xff]
    %v339 = vld [vmem:[#allocation7 + $0xa8] sm:$0xff]
    %v340 = vld [vmem:[#allocation7 + $0xb0] sm:$0xff]
    %v341 = vld [vmem:[#allocation7 + $0xb8] sm:$0xff]
    %v342 = vld [vmem:[#allocation7 + $0xc0] sm:$0xff]
    %v343 = vld [vmem:[#allocation7 + $0xc8] sm:$0xff]
    %v344 = vld [vmem:[#allocation7 + $0xd0] sm:$0xff]
    %v345 = vld [vmem:[#allocation7 + $0xd8] sm:$0xff]
    %v346 = vld [vmem:[#allocation7 + $0xe0] sm:$0xff]
    %v347 = vld [vmem:[#allocation7 + $0xe8] sm:$0xff]
    %v348 = vld [vmem:[#allocation7 + $0xf0] sm:$0xff]
    %v349 = vld [vmem:[#allocation7 + $0xf8] sm:$0xff]
    %v350 = vld [vmem:[%s4] sm:$0x1]
    %v352 = vlaneseq
    %v353 = vshrl.u32 %v352, 7
    %v354 = vsub.s32 0, %v353
    %v355 = vrot.slane %v350, %v354
    %357 = vmatprep.subr.mxu0 0.0
    %358 = vmatpush1.msra.mxu0 %v318
    %359 = vmatprep.subr.mxu0 0.0
    %360 = vmatpush1.msra.mxu0 %v319
    %361 = vmatprep.subr.mxu0 0.0
    %362 = vmatpush1.msra.mxu0 %v320
    %363 = vmatprep.subr.mxu0 0.0
    %364 = vmatpush1.msra.mxu0 %v321
    %365 = vmatprep.subr.mxu0 0.0
    %366 = vmatpush1.msra.mxu0 %v322
    %367 = vmatprep.subr.mxu0 0.0
    %368 = vmatpush1.msra.mxu0 %v323
    %369 = vmatprep.subr.mxu0 0.0
    %370 = vmatpush1.msra.mxu0 %v324
    %371 = vmatprep.subr.mxu0 0.0
    %372 = vmatpush1.msra.mxu0 %v325
    %373 = vmatprep.subr.mxu0 0.0
    %374 = vmatpush1.msra.mxu0 %v326
    %375 = vmatprep.subr.mxu0 0.0
    %376 = vmatpush1.msra.mxu0 %v327
    %377 = vmatprep.subr.mxu0 0.0
    %378 = vmatpush1.msra.mxu0 %v328
    %379 = vmatprep.subr.mxu0 0.0
    %380 = vmatpush1.msra.mxu0 %v329
    %381 = vmatprep.subr.mxu0 0.0
    %382 = vmatpush1.msra.mxu0 %v330
    %383 = vmatprep.subr.mxu0 0.0
    %384 = vmatpush1.msra.mxu0 %v331
    %385 = vmatprep.subr.mxu0 0.0
    %386 = vmatpush1.msra.mxu0 %v332
    %387 = vmatprep.subr.mxu0 0.0
    %388 = vmatpush1.msra.mxu0 %v333
    %389 = vmatprep.subr.mxu0 0.0
    %390 = vmatpush1.msra.mxu0 %v334
    %391 = vmatprep.subr.mxu0 0.0
    %392 = vmatpush1.msra.mxu0 %v335
    %393 = vmatprep.subr.mxu0 0.0
    %394 = vmatpush1.msra.mxu0 %v336
    %395 = vmatprep.subr.mxu0 0.0
    %396 = vmatpush1.msra.mxu0 %v337
    %397 = vmatprep.subr.mxu0 0.0
    %398 = vmatpush1.msra.mxu0 %v338
    %399 = vmatprep.subr.mxu0 0.0
    %400 = vmatpush1.msra.mxu0 %v339
    %401 = vmatprep.subr.mxu0 0.0
    %402 = vmatpush1.msra.mxu0 %v340
    %403 = vmatprep.subr.mxu0 0.0
    %404 = vmatpush1.msra.mxu0 %v341
    %405 = vmatprep.subr.mxu0 0.0
    %406 = vmatpush1.msra.mxu0 %v342
    %407 = vmatprep.subr.mxu0 0.0
    %408 = vmatpush1.msra.mxu0 %v343
    %409 = vmatprep.subr.mxu0 0.0
    %410 = vmatpush1.msra.mxu0 %v344
    %411 = vmatprep.subr.mxu0 0.0
    %412 = vmatpush1.msra.mxu0 %v345
    %413 = vmatprep.subr.mxu0 0.0
    %414 = vmatpush1.msra.mxu0 %v346
    %415 = vmatprep.subr.mxu0 0.0
    %416 = vmatpush1.msra.mxu0 %v347
    %417 = vmatprep.subr.mxu0 0.0
    %418 = vmatpush1.msra.mxu0 %v348
    %419 = vmatprep.subr.mxu0 0.0
    %420 = vmatpush1.msra.mxu0 %v349
    %421 = vmatprep.mubr.f32.mxu0 %v317
    %422 = vmatmul.mubr.f32.gmra.mrb[0].mxu0 %v316
    %v423 = vpop.f32.mrb[0].mxu0
    %v424 = vadd.f32 %v355, %v423
    %v425 = vpop.f32.mrb[0].mxu0
    %426 = vdwg.mxu0
    %v427 = vmax.f32 %v424, 0.0
    %v428 = vld [vmem:[%s5] sm:$0x1]
    %v430 = vlaneseq
    %v431 = vshrl.u32 %v430, 7
    %v432 = vsub.s32 0, %v431
    %v433 = vrot.slane %v428, %v432
    %v435 = vmul.f32 %v427, %v433
    %436 = vadd.xlane.f32.xlu0 %v435
    %v437 = vpop.xlane.xlu0 %436
    %s438 = sld [smem:[#allocation2]]
    %v439 = vstv %s438
    %v440 = vadd.f32 %v437, %v439
    %v441 = vtanh.pop %v440
    %vm442 = vcmask 7168
    %443 = vst.msk [vmem:[%s7] sm:$0xff] %vm442, %v441
    // Predicated region
    $region42: #{tpu_custom_call.1} parent=1 // pred_check
      _
    $region43: #{tpu_custom_call.1} parent=1 // pred_check_branch
      %445 = sbr.rel (0) target = $region45
    $region44: #{tpu_custom_call.1} parent=1 // pred_region
      _
    $region45: #{tpu_custom_call.1} parent=1 // pred_fallthru
      _
    // Predicated region
    $region46: #{tpu_custom_call.1} parent=1 // pred_check
      _
    $region47: #{tpu_custom_call.1} parent=1 // pred_check_branch
      %447 = sbr.rel (0) target = $region49
    $region48: #{tpu_custom_call.1} parent=1 // pred_region
      _
    $region49: #{tpu_custom_call.1} parent=1 // pred_fallthru
      _
    %448 = vsyncpa [#allocation4], 1
    %449 = vsyncpa [#allocation6], 1

</llo_original>
